<compile_context>
chip_gen: v6e
topology: v6e:2x2x1
jax: 0.10.0
libtpu: 0.0.40
codegen_flags: <defaults>
</compile_context>

<pallas_src>
import functools

import jax
import jax.numpy as jnp
from jax import lax
from jax.experimental import pallas as pl
from jax.experimental.pallas import tpu as pltpu


# ------------------------------- helpers -------------------------------------

def _sublane_pack(dtype):
    """Native sublane packing: 8 for 32-bit, 16 for 16-bit, 32 for 8-bit."""
    itemsize = jnp.dtype(dtype).itemsize
    return max(8, (4 // max(1, itemsize)) * 8)


def _round_up(n, m):
    return ((n + m - 1) // m) * m


def _choose_row_tile(rows, hw, pack, budget_bytes):
    """Largest row tile (multiple of `pack`, divides `rows`) whose f32 working
    set (tm * hw * 4B) stays under `budget_bytes`, capped so the grid keeps
    >= 4 steps when possible (v7x megacore sharding)."""
    by_budget = max(pack, (budget_bytes // max(1, hw * 4)) // pack * pack)
    tm = min(rows, by_budget, 1024)
    if rows >= 4 * pack:                       # keep >= 4 grid steps if we can
        tm = min(tm, max(pack, (rows // 4) // pack * pack))
    tm = max(tm, pack)
    while tm > pack and rows % tm != 0:
        tm -= pack
    return tm


def _choose_hw_tile(hw, tm, budget_bytes):
    """Multiple of 128 dividing hw with tm * thw * 4B under `budget_bytes`."""
    by_budget = max(128, (budget_bytes // max(1, tm * 4)) // 128 * 128)
    thw = min(hw, by_budget)
    while thw > 128 and hw % thw != 0:
        thw -= 128
    return thw


def _vmem_limit_bytes(blocks):
    """Scoped-VMEM request sized from the pipeline working set: two buffers per
    block (double-buffering) plus ~one f32 temporary per element + margin."""
    need = 0
    for elems, itemsize in blocks:
        need += elems * (2 * itemsize + 4)
    need += 2 << 20
    return int(min(max(need, 16 << 20), 48 << 20))


# ------------------------------ kernels --------------------------------------

def _adain_kernel(x_ref, gb_ref, o_ref, *, eps, inv_hw):
    """Single fused pass. x: (tm, HW); gb: (tm, 2) f32 [gamma, beta]."""
    x = x_ref[...]
    xf = x.astype(jnp.float32)
    gb = gb_ref[...]

    mean = jnp.sum(xf, axis=1, keepdims=True) * inv_hw          # (tm, 1)
    d = xf - mean
    var = jnp.sum(d * d, axis=1, keepdims=True) * inv_hw        # biased var

    scale = lax.rsqrt(var + eps) * gb[:, 0:1]                   # EUP rsqrt
    shift = gb[:, 1:2] - mean * scale                           # fold mean in

    if x.dtype == jnp.float32:
        out = xf * scale + shift
    else:
        # sub-32-bit input: keep the per-element FMA in the native dtype
        out = x * scale.astype(x.dtype) + shift.astype(x.dtype)
    o_ref[...] = out.astype(o_ref.dtype)


def _stats_kernel(x_ref, sum_ref, sq_ref):
    """Accumulate per-row sum / sum-of-squares across the hw grid axis."""
    k = pl.program_id(1)
    xf = x_ref[...].astype(jnp.float32)
    ps = jnp.sum(xf, axis=1, keepdims=True)
    pq = jnp.sum(xf * xf, axis=1, keepdims=True)

    @pl.when(k == 0)
    def _():
        sum_ref[...] = ps
        sq_ref[...] = pq

    @pl.when(k > 0)
    def _():
        sum_ref[...] = sum_ref[...] + ps
        sq_ref[...] = sq_ref[...] + pq


def _apply_kernel(x_ref, gb_ref, sum_ref, sq_ref, o_ref, *, eps, inv_hw):
    """Normalize + affine using precomputed per-row stats."""
    x = x_ref[...]
    gb = gb_ref[...]
    mean = sum_ref[...] * inv_hw
    var = jnp.maximum(sq_ref[...] * inv_hw - mean * mean, 0.0)

    scale = lax.rsqrt(var + eps) * gb[:, 0:1]
    shift = gb[:, 1:2] - mean * scale

    if x.dtype == jnp.float32:
        out = x * scale + shift
    else:
        out = x * scale.astype(x.dtype) + shift.astype(x.dtype)
    o_ref[...] = out.astype(o_ref.dtype)


# ------------------------------ wrapper --------------------------------------

def adain_pallas(x, gamma, beta, *, eps=1e-5,
                 block_budget_bytes=2 << 20,
                 hw_tile_threshold_bytes=8 << 20):
    """x: (B, C, H, W), gamma/beta: (B, C) -> (B, C, H, W)."""
    B, C, H, W = x.shape
    rows, hw = B * C, H * W
    inv_hw = 1.0 / float(hw)
    in_sz = jnp.dtype(x.dtype).itemsize

    pack = _sublane_pack(x.dtype)
    rows_p = _round_up(rows, pack)

    x2 = x.reshape(rows, hw)
    gb = jnp.stack([gamma.reshape(rows), beta.reshape(rows)], axis=-1)
    gb = gb.astype(jnp.float32)                                  # (rows, 2)
    if rows_p != rows:
        # Padded rows are all-zero -> mean=0, var=0, scale=0, shift=0 -> out=0.
        x2 = jnp.pad(x2, ((0, rows_p - rows), (0, 0)))
        gb = jnp.pad(gb, ((0, rows_p - rows), (0, 0)))

    tm = _choose_row_tile(rows_p, hw, pack, block_budget_bytes)

    # If even a minimum-height block is too big, tile hw with a two-sweep pass.
    min_block_f32 = pack * hw * 4
    use_hw_tiling = (min_block_f32 > hw_tile_threshold_bytes) and (hw % 128 == 0)
    # TODO(synk): huge H*W that is not a multiple of 128 still takes the
    # single-block-per-row path (no masked hw tiling implemented).

    if not use_hw_tiling:
        vmem = _vmem_limit_bytes([(tm * hw, in_sz),     # input block
                                  (tm * hw, in_sz),     # output block
                                  (tm * 2, 4)])         # gamma/beta block
        out = pl.pallas_call(
            functools.partial(_adain_kernel, eps=float(eps), inv_hw=inv_hw),
            out_shape=jax.ShapeDtypeStruct((rows_p, hw), x.dtype),
            grid=(rows_p // tm,),
            in_specs=[
                pl.BlockSpec((tm, hw), lambda i: (i, 0)),
                pl.BlockSpec((tm, 2), lambda i: (i, 0)),
            ],
            out_specs=pl.BlockSpec((tm, hw), lambda i: (i, 0)),
            compiler_params=pltpu.CompilerParams(
                dimension_semantics=("parallel",),
                vmem_limit_bytes=vmem),
        )(x2, gb)
    else:
        thw = _choose_hw_tile(hw, tm, block_budget_bytes)
        n_rt, n_ht = rows_p // tm, hw // thw

        stats_vmem = _vmem_limit_bytes([(tm * thw, in_sz), (tm, 4), (tm, 4)])
        s_sum, s_sq = pl.pallas_call(
            _stats_kernel,
            out_shape=(jax.ShapeDtypeStruct((rows_p, 1), jnp.float32),
                       jax.ShapeDtypeStruct((rows_p, 1), jnp.float32)),
            grid=(n_rt, n_ht),
            in_specs=[pl.BlockSpec((tm, thw), lambda i, k: (i, k))],
            out_specs=(pl.BlockSpec((tm, 1), lambda i, k: (i, 0)),
                       pl.BlockSpec((tm, 1), lambda i, k: (i, 0))),
            compiler_params=pltpu.CompilerParams(
                dimension_semantics=("parallel", "arbitrary"),
                vmem_limit_bytes=stats_vmem),
        )(x2)

        apply_vmem = _vmem_limit_bytes([(tm * thw, in_sz), (tm * thw, in_sz),
                                        (tm * 2, 4), (tm, 4), (tm, 4)])
        out = pl.pallas_call(
            functools.partial(_apply_kernel, eps=float(eps), inv_hw=inv_hw),
            out_shape=jax.ShapeDtypeStruct((rows_p, hw), x.dtype),
            grid=(n_rt, n_ht),
            in_specs=[
                pl.BlockSpec((tm, thw), lambda i, k: (i, k)),
                pl.BlockSpec((tm, 2), lambda i, k: (i, 0)),
                pl.BlockSpec((tm, 1), lambda i, k: (i, 0)),
                pl.BlockSpec((tm, 1), lambda i, k: (i, 0)),
            ],
            out_specs=pl.BlockSpec((tm, thw), lambda i, k: (i, k)),
            compiler_params=pltpu.CompilerParams(
                dimension_semantics=("parallel", "parallel"),
                vmem_limit_bytes=apply_vmem),
        )(x2, gb, s_sum, s_sq)

    return out[:rows].reshape(B, C, H, W)


# ------------------------------ reference ------------------------------------

def reference_adain(x, gamma, beta, eps=1e-5):
    x = x.astype(jnp.float32)
    mean = jnp.mean(x, axis=(2, 3), keepdims=True)
    var = jnp.mean((x - mean) ** 2, axis=(2, 3), keepdims=True)   # biased
    xn = (x - mean) / jnp.sqrt(var + eps)
    return xn * gamma[:, :, None, None] + beta[:, :, None, None]


# -------------------------------- main ----------------------------------------

if __name__ == "__main__":
    key = jax.random.PRNGKey(0)
    kx, kg, kb = jax.random.split(key, 3)

    B, C, H, W = 2, 4, 16, 16
    x = jax.random.normal(kx, (B, C, H, W), jnp.float32)
    gamma = jax.random.normal(kg, (B, C), jnp.float32)
    beta = jax.random.normal(kb, (B, C), jnp.float32)

    ref = jax.block_until_ready(reference_adain(x, gamma, beta))

    # 1) fused single-pass path (the common case)
    out = jax.block_until_ready(adain_pallas(x, gamma, beta))
    assert out.shape == (B, C, H, W), out.shape
    err = float(jnp.max(jnp.abs(out - ref)))
    assert jnp.allclose(out, ref, atol=1e-4, rtol=1e-4), err

    # 2) force the two-sweep hw-tiled path (large-H*W fallback) to verify it
    out_t = jax.block_until_ready(
        adain_pallas(x, gamma, beta,
                     block_budget_bytes=4096, hw_tile_threshold_bytes=1024))
    err_t = float(jnp.max(jnp.abs(out_t - ref)))
    assert jnp.allclose(out_t, ref, atol=1e-4, rtol=1e-4), err_t

    # 3) bf16 input: exercises 16-row sublane packing (row padding) and the
    #    native-dtype epilogue
    out_bf = jax.block_until_ready(adain_pallas(x.astype(jnp.bfloat16), gamma, beta))
    assert out_bf.dtype == jnp.bfloat16
    err_bf = float(jnp.max(jnp.abs(out_bf.astype(jnp.float32) - ref)))
    assert jnp.allclose(out_bf.astype(jnp.float32), ref, atol=1e-1, rtol=1e-1), err_bf

    print("KERNEL_OK")
</pallas_src>

<mosaic_0001>
module attributes {stable_mosaic.version = 11 : i64} {
  func.func @_adain_kernel(%arg0: i32, %arg1: memref<8x256xf32, #tpu.memory_space<vmem>>, %arg2: memref<8x2xf32, #tpu.memory_space<vmem>>, %arg3: memref<8x256xf32, #tpu.memory_space<vmem>>) attributes {dimension_semantics = [#tpu.dimension_semantics<parallel>], iteration_bounds = array<i64: 1>, scalar_prefetch = 0 : i64, scratch_operands = 0 : i64, tpu.core_type = #tpu.core_type<tc>, window_params = [{transform_indices = @transform_0, window_bounds = array<i64: 8, 256>}, {transform_indices = @transform_1, window_bounds = array<i64: 8, 2>}, {transform_indices = @transform_2, window_bounds = array<i64: 8, 256>}]} {
    %c0 = arith.constant 0 : index
    %c0_0 = arith.constant 0 : index
    %0 = vector.load %arg1[%c0, %c0_0] : memref<8x256xf32, #tpu.memory_space<vmem>>, vector<8x256xf32>
    %c0_1 = arith.constant 0 : index
    %c0_2 = arith.constant 0 : index
    %1 = vector.load %arg2[%c0_1, %c0_2] : memref<8x2xf32, #tpu.memory_space<vmem>>, vector<8x2xf32>
    %cst = arith.constant dense<0.000000e+00> : vector<8xf32>
    %2 = vector.multi_reduction <add>, %0, %cst [1] : vector<8x256xf32> to vector<8xf32>
    %3 = vector.shape_cast %2 : vector<8xf32> to vector<8x1xf32>
    %cst_3 = arith.constant 3.906250e-03 : f32
    %4 = vector.broadcast %cst_3 : f32 to vector<8x1xf32>
    %5 = arith.mulf %3, %4 : vector<8x1xf32>
    %6 = vector.broadcast %5 : vector<8x1xf32> to vector<8x256xf32>
    %7 = arith.subf %0, %6 : vector<8x256xf32>
    %8 = arith.mulf %7, %7 : vector<8x256xf32>
    %cst_4 = arith.constant dense<0.000000e+00> : vector<8xf32>
    %9 = vector.multi_reduction <add>, %8, %cst_4 [1] : vector<8x256xf32> to vector<8xf32>
    %10 = vector.shape_cast %9 : vector<8xf32> to vector<8x1xf32>
    %cst_5 = arith.constant 3.906250e-03 : f32
    %11 = vector.broadcast %cst_5 : f32 to vector<8x1xf32>
    %12 = arith.mulf %10, %11 : vector<8x1xf32>
    %cst_6 = arith.constant 9.99999974E-6 : f32
    %13 = vector.broadcast %cst_6 : f32 to vector<8x1xf32>
    %14 = arith.addf %12, %13 : vector<8x1xf32>
    %15 = math.rsqrt %14 : vector<8x1xf32>
    %16 = vector.extract_strided_slice %1 {offsets = [0, 0], sizes = [8, 1], strides = [1, 1]} : vector<8x2xf32> to vector<8x1xf32>
    %17 = arith.mulf %15, %16 : vector<8x1xf32>
    %18 = vector.extract_strided_slice %1 {offsets = [0, 1], sizes = [8, 1], strides = [1, 1]} : vector<8x2xf32> to vector<8x1xf32>
    %19 = arith.mulf %5, %17 : vector<8x1xf32>
    %20 = arith.subf %18, %19 : vector<8x1xf32>
    %21 = vector.broadcast %17 : vector<8x1xf32> to vector<8x256xf32>
    %22 = arith.mulf %0, %21 : vector<8x256xf32>
    %23 = vector.broadcast %20 : vector<8x1xf32> to vector<8x256xf32>
    %24 = arith.addf %22, %23 : vector<8x256xf32>
    %c0_7 = arith.constant 0 : index
    %c0_8 = arith.constant 0 : index
    %25 = vector.load %arg3[%c0_7, %c0_8] : memref<8x256xf32, #tpu.memory_space<vmem>>, vector<8x256xf32>
    tpu.vector_store %arg3[%c0_7, %c0_8], %24 {strides = array<i32>} : memref<8x256xf32, #tpu.memory_space<vmem>>, vector<8x256xf32>,
    return
  }
  func.func @transform_0(%arg0: i32) -> (i32, i32) {
    %c0_i32 = arith.constant 0 : i32
    %c0_i32_0 = arith.constant 0 : i32
    return %arg0, %c0_i32 : i32, i32
  }
  func.func @transform_1(%arg0: i32) -> (i32, i32) {
    %c0_i32 = arith.constant 0 : i32
    %c0_i32_0 = arith.constant 0 : i32
    return %arg0, %c0_i32 : i32, i32
  }
  func.func @transform_2(%arg0: i32) -> (i32, i32) {
    %c0_i32 = arith.constant 0 : i32
    %c0_i32_0 = arith.constant 0 : i32
    return %arg0, %c0_i32 : i32, i32
  }
}

</mosaic_0001>

<llo_original>
// kernel: tpu_custom_call.1
$region0: #{tpu_custom_call.1}
  #allocation0 [shape = 'u32[]', space=smem, size = 0x4, offset = 0x4, fixed_abs, tag = 'smem constant byte address 0x4 - core index']
  #allocation1 [shape = 'u32[144,128]{1,0:T(1,128)}', space=vmem, size = 0x12000, scoped, tag = 'internal scratch']
  %s0 = inlined_call_operand.hbm [shape: f32[8,256], index: 0, kind: input, shape index: {}]
  %s1 = inlined_call_operand.vmem [shape: f32[8,2], index: 1, kind: input, shape index: {}]
  %s2 = inlined_call_operand.hbm [shape: f32[8,256], index: 2, kind: output, shape index: {}]
  %s3 = sld [smem:[#allocation0]]
  $region22: #{tpu_custom_call.1} parent=0
    _
  %s5 = ssub.s32 1, %s3
  %s6 = scalar_select 0, %s5, %s3
  $region1: #{tpu_custom_call.1} parent=0
    #allocation2 [shape = 'u8[8192]{0}', space=vmem, size = 0x2000, scoped, tag = 'input window, operand 0, single buffered']
    #allocation3 [shape = 's32[1]{0}', space=sflag, size = 0x4, scoped, tag = 'scoped memory for tpu_custom_call.1']
    #allocation4 [shape = 's32[1]{0}', space=sflag, size = 0x4, scoped, tag = 'scoped memory for tpu_custom_call.1']
    #allocation5 [shape = 'u8[8192]{0}', space=vmem, size = 0x2000, scoped, tag = 'output window, operand 0, single buffered']
    %7 = vsyncpa [#allocation3], 0
    %8 = vsyncpa [#allocation4], 0
    // Predicated region
    $region2: #{tpu_custom_call.1} parent=1 // pred_check
      _
    $region3: #{tpu_custom_call.1} parent=1 // pred_check_branch
      %10 = sbr.rel (0) target = $region5
    $region4: #{tpu_custom_call.1} parent=1 // pred_region
      %s12 = ssub.s32 256, 256
      %13 = vsyncadd [#allocation3], %s12
      %s15 = sshll.u32 [#allocation2], 4
      %s16 = int_to_ptr.vmem [resolvable:$true] %s15
      %18 = dma.hbm_to_vmem [thread:$0]  %s0, 256, %s16, [#allocation3]
    $region5: #{tpu_custom_call.1} parent=1 // pred_fallthru
      _
    // Predicated region
    $region6: #{tpu_custom_call.1} parent=1 // pred_check
      _
    $region7: #{tpu_custom_call.1} parent=1 // pred_check_branch
      %20 = sbr.rel (0) target = $region9
    $region8: #{tpu_custom_call.1} parent=1 // pred_region
      _
    $region9: #{tpu_custom_call.1} parent=1 // pred_fallthru
      _
    // Predicated region
    $region10: #{tpu_custom_call.1} parent=1 // pred_check
      _
    $region11: #{tpu_custom_call.1} parent=1 // pred_check_branch
      %22 = sbr.rel (0) target = $region13
    $region12: #{tpu_custom_call.1} parent=1 // pred_region
      %23 = dma.done [#allocation3], 256
    $region13: #{tpu_custom_call.1} parent=1 // pred_fallthru
      _
    %v24 = vld [vmem:[#allocation2] sm:$0xff]
    %v25 = vld [vmem:[#allocation2 + $0x8] sm:$0xff]
    %v26 = vld [vmem:[%s1] sm:$0xff]
    %v27 = vadd.f32 %v24, %v25
    %28 = vadd.xlane.f32.xlu0 %v27
    %v29 = vpop.xlane.xlu0 %28
    %v30 = vmul.f32 %v29, 0.00390625
    %v31 = vsub.f32 %v24, %v30
    %v32 = vsub.f32 %v25, %v30
    %v33 = vmul.f32 %v31, %v31
    %v34 = vmul.f32 %v32, %v32
    %v35 = vadd.f32 %v33, %v34
    %36 = vadd.xlane.f32.xlu0 %v35
    %v37 = vpop.xlane.xlu0 %36
    %v38 = vmul.f32 %v37, 0.00390625
    %v39 = vadd.f32 %v38, 1e-05
    %v40 = vrsqrt.pop %v39
    %v41 = vmul.f32 %v40, %v26
    %v42 = vmul.f32 %v30, %v41
    %44 = vrot.lane.b32.xlu0 %v42, 1
    %v45 = vpop.permute.xlu0 %44
    %v47 = vsub.f32 %v26, %v45
    %49 = vset.pattern.permute.xlu0 0
    %50 = vperm.xlu0 %49, %v41
    %v51 = vpop.permute.xlu0 %50
    %v53 = vmul.f32 %v24, %v51
    %v54 = vmul.f32 %v25, %v51
    %56 = vset.pattern.permute.xlu0 1
    %57 = vperm.xlu0 %56, %v47
    %v58 = vpop.permute.xlu0 %57
    %v60 = vadd.f32 %v53, %v58
    %v61 = vadd.f32 %v54, %v58
    %62 = vst [vmem:[#allocation5] sm:$0xff] %v60
    %63 = vst [vmem:[#allocation5 + $0x8] sm:$0xff] %v61
    // Predicated region
    $region14: #{tpu_custom_call.1} parent=1 // pred_check
      _
    $region15: #{tpu_custom_call.1} parent=1 // pred_check_branch
      %65 = sbr.rel (0) target = $region17
    $region16: #{tpu_custom_call.1} parent=1 // pred_region
      %s67 = ssub.s32 256, 256
      %68 = vsyncadd [#allocation4], %s67
      %s70 = sshll.u32 [#allocation5], 4
      %s71 = int_to_ptr.vmem [resolvable:$true] %s70
      %73 = dma.vmem_to_hbm [thread:$0]  %s71, 256, %s2, [#allocation4]
    $region17: #{tpu_custom_call.1} parent=1 // pred_fallthru
      _
    // Predicated region
    $region18: #{tpu_custom_call.1} parent=1 // pred_check
      _
    $region19: #{tpu_custom_call.1} parent=1 // pred_check_branch
      %75 = sbr.rel (0) target = $region21
    $region20: #{tpu_custom_call.1} parent=1 // pred_region
      %76 = dma.done [#allocation4], 256
    $region21: #{tpu_custom_call.1} parent=1 // pred_fallthru
      _
    %77 = vsyncpa [#allocation3], 1
    %78 = vsyncpa [#allocation4], 1

</llo_original>
